<compile_context>
chip_gen: v5e
topology: v5e:2x2
jax: 0.10.0
libtpu: 0.0.40
codegen_flags: <defaults>
</compile_context>

<pallas_src>
import jax
import jax.numpy as jnp
from jax.experimental import pallas as pl
from jax.experimental.pallas import tpu as pltpu


def _round_up(a: int, b: int) -> int:
    return ((a + b - 1) // b) * b


def linear_kernel(w_ref, b_ref, x_ref, o_ref):
    # w_ref: (in_features,) f32 in SMEM, b_ref: (1,) f32 in SMEM
    # x_ref: (in_features, tile_r, 128) f32 in VMEM (one lane-dense batch slab)
    # o_ref: (tile_r, 128) f32 in VMEM
    acc = jnp.full(o_ref.shape, b_ref[0], dtype=jnp.float32)   # bias as SMEM scalar
    for k in range(x_ref.shape[0]):          # static unroll over tiny in_features
        acc = acc + w_ref[k] * x_ref[k]      # scalar-operand FMA on the VPU (no MXU)
    o_ref[...] = acc                          # fully dense, unmasked vst


def linear_net_forward(x, weight, bias, *, max_tile_rows: int = 1024):
    """Pallas equivalent of LinearNet.forward: nn.Linear(in_features, 1).

    x:      (N, in_features) float32
    weight: (1, in_features) float32  (PyTorch layout)
    bias:   (1,)             float32
    returns (N, 1) float32
    """
    n, in_features = x.shape
    out_features = weight.shape[0]
    assert out_features == 1, "LinearNet has a single output feature"

    # --- wrapper-side layout plumbing: make the output lane-dense -------------
    # Pad the batch to a whole number of 128-lane columns and view it as a
    # (rows, 128) slab so the output store is fully (8,128)-dense instead of the
    # pathological (N, 1) masked 1/128-lane stores.
    n128 = _round_up(max(n, 1), 128)
    rows = n128 // 128
    tile_r = min(max_tile_rows, _round_up(rows, 8))   # rows per grid step (mult of 8)
    rows_pad = _round_up(rows, tile_r)
    n_pad = rows_pad * 128

    x_pad = jnp.pad(x, ((0, n_pad - n), (0, 0)))
    xr = x_pad.T.reshape(in_features, rows_pad, 128)    # (in, rows_pad, 128)

    w = weight.reshape(in_features).astype(jnp.float32)  # scalars -> SMEM
    b = bias.reshape(1).astype(jnp.float32)

    grid = (rows_pad // tile_r,)   # batch tiles; auto double-buffered by BlockSpec

    y2d = pl.pallas_call(
        linear_kernel,
        out_shape=jax.ShapeDtypeStruct((rows_pad, 128), jnp.float32),
        grid=grid,
        in_specs=[
            pl.BlockSpec(memory_space=pltpu.MemorySpace.SMEM),   # weight scalars
            pl.BlockSpec(memory_space=pltpu.MemorySpace.SMEM),   # bias scalar
            pl.BlockSpec((in_features, tile_r, 128), lambda i: (0, i, 0)),
        ],
        out_specs=pl.BlockSpec((tile_r, 128), lambda i: (i, 0)),
        compiler_params=pltpu.CompilerParams(
            # batch axis is independent -> sharded across the two TCs on v7x
            dimension_semantics=("parallel",),
        ),
        cost_estimate=pl.CostEstimate(
            flops=2 * n_pad * in_features,
            transcendentals=0,
            bytes_accessed=4 * (n_pad * (in_features + 1) + in_features + 1),
        ),
    )(w, b, xr)

    # Undo the layout plumbing: back to nn.Linear's (N, 1).
    return y2d.reshape(n_pad, 1)[:n]


if __name__ == "__main__":
    # NOTE: at these toy shapes pallas_call launch overhead dominates and plain
    # XLA (x @ W.T + b) would be faster; the kernel pays off at large N.
    key = jax.random.PRNGKey(0)
    k_x, k_w, k_b = jax.random.split(key, 3)

    num_inputs = 2   # matches `num_inputs = 2` in the reference script
    batch = 16       # small synthetic batch of "features" rows

    x = jax.random.normal(k_x, (batch, num_inputs), dtype=jnp.float32)
    weight = jax.random.normal(k_w, (1, num_inputs), dtype=jnp.float32) * 0.1
    bias = jax.random.normal(k_b, (1,), dtype=jnp.float32) * 0.1

    y = linear_net_forward(x, weight, bias)
    y = jax.block_until_ready(y)

    # Sanity check against plain-JAX reference.
    y_ref = x @ weight.T + bias
    assert y.shape == (batch, 1)
    assert jnp.allclose(y, y_ref, atol=1e-5), "mismatch vs reference"

    print("KERNEL_OK")
</pallas_src>

<mosaic_0001>
module attributes {stable_mosaic.version = 11 : i64} {
  func.func @linear_kernel(%arg0: i32, %arg1: memref<2xf32, #tpu.memory_space<smem>>, %arg2: memref<1xf32, #tpu.memory_space<smem>>, %arg3: memref<2x8x128xf32, #tpu.memory_space<vmem>>, %arg4: memref<8x128xf32, #tpu.memory_space<vmem>>) attributes {dimension_semantics = [#tpu.dimension_semantics<parallel>], iteration_bounds = array<i64: 1>, scalar_prefetch = 0 : i64, scratch_operands = 0 : i64, tpu.core_type = #tpu.core_type<tc>, window_params = [{transform_indices = @transform_0, window_bounds = array<i64: 2>}, {transform_indices = @transform_1, window_bounds = array<i64: 1>}, {transform_indices = @transform_2, window_bounds = array<i64: 2, 8, 128>}, {transform_indices = @transform_3, window_bounds = array<i64: 8, 128>}]} {
    %c0 = arith.constant 0 : index
    %0 = memref.load %arg2[%c0] : memref<1xf32, #tpu.memory_space<smem>>
    %1 = vector.broadcast %0 : f32 to vector<8x128xf32>
    %c0_0 = arith.constant 0 : index
    %2 = memref.load %arg1[%c0_0] : memref<2xf32, #tpu.memory_space<smem>>
    %c0_1 = arith.constant 0 : index
    %c0_2 = arith.constant 0 : index
    %c0_3 = arith.constant 0 : index
    %3 = vector.load %arg3[%c0_1, %c0_2, %c0_3] : memref<2x8x128xf32, #tpu.memory_space<vmem>>, vector<1x8x128xf32>
    %4 = vector.shape_cast %3 : vector<1x8x128xf32> to vector<8x128xf32>
    %5 = vector.broadcast %2 : f32 to vector<8x128xf32>
    %6 = arith.mulf %5, %4 : vector<8x128xf32>
    %7 = arith.addf %1, %6 : vector<8x128xf32>
    %c1 = arith.constant 1 : index
    %8 = memref.load %arg1[%c1] : memref<2xf32, #tpu.memory_space<smem>>
    %c1_4 = arith.constant 1 : index
    %c0_5 = arith.constant 0 : index
    %c0_6 = arith.constant 0 : index
    %9 = vector.load %arg3[%c1_4, %c0_5, %c0_6] : memref<2x8x128xf32, #tpu.memory_space<vmem>>, vector<1x8x128xf32>
    %10 = vector.shape_cast %9 : vector<1x8x128xf32> to vector<8x128xf32>
    %11 = vector.broadcast %8 : f32 to vector<8x128xf32>
    %12 = arith.mulf %11, %10 : vector<8x128xf32>
    %13 = arith.addf %7, %12 : vector<8x128xf32>
    %c0_7 = arith.constant 0 : index
    %c0_8 = arith.constant 0 : index
    %14 = vector.load %arg4[%c0_7, %c0_8] : memref<8x128xf32, #tpu.memory_space<vmem>>, vector<8x128xf32>
    tpu.vector_store %arg4[%c0_7, %c0_8], %13 {strides = array<i32>} : memref<8x128xf32, #tpu.memory_space<vmem>>, vector<8x128xf32>,
    return
  }
  func.func @transform_0(%arg0: i32) -> i32 {
    %c0_i32 = arith.constant 0 : i32
    %c0_i32_0 = arith.constant 0 : i32
    return %c0_i32 : i32
  }
  func.func @transform_1(%arg0: i32) -> i32 {
    %c0_i32 = arith.constant 0 : i32
    %c0_i32_0 = arith.constant 0 : i32
    return %c0_i32 : i32
  }
  func.func @transform_2(%arg0: i32) -> (i32, i32, i32) {
    %c0_i32 = arith.constant 0 : i32
    %c0_i32_0 = arith.constant 0 : i32
    %c0_i32_1 = arith.constant 0 : i32
    return %c0_i32, %arg0, %c0_i32_0 : i32, i32, i32
  }
  func.func @transform_3(%arg0: i32) -> (i32, i32) {
    %c0_i32 = arith.constant 0 : i32
    %c0_i32_0 = arith.constant 0 : i32
    return %arg0, %c0_i32 : i32, i32
  }
}

</mosaic_0001>

<llo_original>
// kernel: tpu_custom_call.1
$region0: #{tpu_custom_call.1}
  #allocation0 [shape = 'u32[]', space=smem, size = 0x4, offset = 0x4, fixed_abs, tag = 'smem constant byte address 0x4 - core index']
  #allocation1 [shape = 'u32[72,128]{1,0:T(1,128)}', space=vmem, size = 0x9000, scoped, tag = 'internal scratch']
  #allocation2 [shape = 'f32[1]{0:T(128)S(6)}', space=smem, size = 0x200, scoped, tag = 'scoped memory for tpu_custom_call.1']
  %s0 = inlined_call_operand.vmem [shape: f32[2], index: 0, kind: input, shape index: {}]
  %s1 = inlined_call_operand.<no memory space> [shape: f32[1], index: 1, kind: input, shape index: {}]
  %s2 = inlined_call_operand.hbm [shape: f32[2,8,128], index: 2, kind: input, shape index: {}]
  %s3 = inlined_call_operand.hbm [shape: f32[8,128], index: 3, kind: output, shape index: {}]
  %s4 = sld [smem:[#allocation0]]
  $region30: #{tpu_custom_call.1} parent=0
    _
  %s6 = ssub.s32 1, %s4
  %s7 = scalar_select 0, %s6, %s4
  %8 = sst [smem:[#allocation2]] %s1
  $region1: #{tpu_custom_call.1} parent=0
    #allocation3 [shape = 'u8[512]{0}', space=smem, size = 0x200, scoped, tag = 'input window, operand 0, single buffered']
    #allocation4 [shape = 's32[1]{0}', space=sflag, size = 0x4, scoped, tag = 'scoped memory for tpu_custom_call.1']
    #allocation5 [shape = 's32[1]{0}', space=sflag, size = 0x4, scoped, tag = 'scoped memory for tpu_custom_call.1']
    #allocation6 [shape = 's32[1]{0}', space=sflag, size = 0x4, scoped, tag = 'scoped memory for tpu_custom_call.1']
    #allocation7 [shape = 'u8[8192]{0}', space=vmem, size = 0x2000, scoped, tag = 'input window, operand 2, single buffered']
    #allocation8 [shape = 'u8[4096]{0}', space=vmem, size = 0x1000, scoped, tag = 'output window, operand 0, single buffered']
    %9 = vsyncpa [#allocation6], 0
    %10 = vsyncpa [#allocation4], 0
    %11 = vsyncpa [#allocation5], 0
    // Predicated region
    $region2: #{tpu_custom_call.1} parent=1 // pred_check
      _
    $region3: #{tpu_custom_call.1} parent=1 // pred_check_branch
      %13 = sbr.rel (0) target = $region5
    $region4: #{tpu_custom_call.1} parent=1 // pred_region
      %15 = vsyncadd [#allocation6], 0
      %s17 = sshll.u32 %s0, 4
      %s18 = int_to_ptr.vmem [resolvable:$true] %s17
      %20 = dma.vmem_to_smem %s18, 16, [#allocation3], [#allocation6]
    $region5: #{tpu_custom_call.1} parent=1 // pred_fallthru
      _
    // Predicated region
    $region6: #{tpu_custom_call.1} parent=1 // pred_check
      _
    $region7: #{tpu_custom_call.1} parent=1 // pred_check_branch
      %22 = sbr.rel (0) target = $region9
    $region8: #{tpu_custom_call.1} parent=1 // pred_region
      _
    $region9: #{tpu_custom_call.1} parent=1 // pred_fallthru
      _
    // Predicated region
    $region10: #{tpu_custom_call.1} parent=1 // pred_check
      _
    $region11: #{tpu_custom_call.1} parent=1 // pred_check_branch
      %24 = sbr.rel (0) target = $region13
    $region12: #{tpu_custom_call.1} parent=1 // pred_region
      %26 = vsyncadd [#allocation4], 0
      %s27 = sshll.u32 %s2, 4
      %s28 = int_to_ptr.hbm [resolvable:$true] %s27
      %s29 = sshll.u32 [#allocation7], 4
      %s30 = int_to_ptr.vmem [resolvable:$true] %s29
      %35 = dma.hbm_to_vmem [thread:$0]  %s28, 256, %s30, [#allocation4], 128, 128, 8
    $region13: #{tpu_custom_call.1} parent=1 // pred_fallthru
      _
    // Predicated region
    $region14: #{tpu_custom_call.1} parent=1 // pred_check
      _
    $region15: #{tpu_custom_call.1} parent=1 // pred_check_branch
      %37 = sbr.rel (0) target = $region17
    $region16: #{tpu_custom_call.1} parent=1 // pred_region
      %39 = dma.done [#allocation6], 16
    $region17: #{tpu_custom_call.1} parent=1 // pred_fallthru
      _
    // Predicated region
    $region18: #{tpu_custom_call.1} parent=1 // pred_check
      _
    $region19: #{tpu_custom_call.1} parent=1 // pred_check_branch
      %41 = sbr.rel (0) target = $region21
    $region20: #{tpu_custom_call.1} parent=1 // pred_region
      %43 = dma.done [#allocation4], 256
    $region21: #{tpu_custom_call.1} parent=1 // pred_fallthru
      _
    %44 = sfence
    %s45 = sld [smem:[#allocation2]]
    %v46 = vstv %s45
    %s47 = sld [smem:[#allocation3]]
    %v48 = vld [vmem:[#allocation7] sm:$0xff]
    %v49 = vstv %s47
    %v50 = vmul.f32 %v49, %v48
    %v51 = vadd.f32 %v46, %v50
    %s52 = sld [smem:[#allocation3 + $0x1]]
    %s53 = scalar_lea.vmem [#allocation7], 8
    %v54 = vld [vmem:[%s53] sm:$0xff]
    %v55 = vstv %s52
    %v56 = vmul.f32 %v55, %v54
    %v57 = vadd.f32 %v51, %v56
    %58 = vst [vmem:[#allocation8] sm:$0xff] %v57
    // Predicated region
    $region22: #{tpu_custom_call.1} parent=1 // pred_check
      _
    $region23: #{tpu_custom_call.1} parent=1 // pred_check_branch
      %60 = sbr.rel (0) target = $region25
    $region24: #{tpu_custom_call.1} parent=1 // pred_region
      %62 = vsyncadd [#allocation5], 0
      %s64 = sshll.u32 [#allocation8], 4
      %s65 = int_to_ptr.vmem [resolvable:$true] %s64
      %s66 = sshll.u32 %s3, 4
      %s67 = int_to_ptr.hbm [resolvable:$true] %s66
      %69 = dma.vmem_to_hbm [thread:$0]  %s65, 128, %s67, [#allocation5]
    $region25: #{tpu_custom_call.1} parent=1 // pred_fallthru
      _
    // Predicated region
    $region26: #{tpu_custom_call.1} parent=1 // pred_check
      _
    $region27: #{tpu_custom_call.1} parent=1 // pred_check_branch
      %71 = sbr.rel (0) target = $region29
    $region28: #{tpu_custom_call.1} parent=1 // pred_region
      %73 = dma.done [#allocation5], 128
    $region29: #{tpu_custom_call.1} parent=1 // pred_fallthru
      _
    %74 = vsyncpa [#allocation4], 1
    %75 = vsyncpa [#allocation5], 1
    %76 = vsyncpa [#allocation6], 1

</llo_original>
